<compile_context>
chip_gen: v7x
topology: tpu7x:2x2x1
jax: 0.10.0
libtpu: 0.0.40
codegen_flags: <defaults>
</compile_context>

<pallas_src>
import jax
import jax.numpy as jnp
from jax import lax
from jax.experimental import pallas as pl
from jax.experimental.pallas import tpu as pltpu


def _round_up(v: int, m: int) -> int:
    return -(-v // m) * m


def _mlp_kernel(x_ref, w1_ref, b1_ref, w2_ref, b2_ref, w3_ref, b3_ref, o_ref):
    # Fused 3-layer MLP on one batch tile. x is cast to the weights' compute dtype
    # here (in VMEM) so the wrapper never materializes a casted copy in HBM.
    x = x_ref[...].astype(w1_ref.dtype)
    h1 = jnp.dot(x, w1_ref[...], preferred_element_type=jnp.float32) + b1_ref[...]
    h1 = jnp.maximum(h1, 0.0)
    h2 = jnp.dot(h1.astype(w2_ref.dtype), w2_ref[...],
                 preferred_element_type=jnp.float32) + b2_ref[...]
    h2 = jnp.maximum(h2, 0.0)
    # Layer 3 with batch mapped to lanes:
    #   out[8, tb] = w3p[8, 64] . h2[tb, 64]^T   (contract the 64-feature dim)
    # Only row 0 of w3p is real, so only row 0 of out is real; the store is lane-dense
    # along batch and the output slab is 8 f32 rows instead of 128.
    out = lax.dot_general(w3_ref[...], h2.astype(w3_ref.dtype),
                          dimension_numbers=(((1,), (1,)), ((), ())),
                          preferred_element_type=jnp.float32)
    o_ref[...] = (out + b3_ref[...]).astype(o_ref.dtype)


def prepare_params(params, compute_dtype=jnp.bfloat16):
    """Cast / pad weights once (call at init, reuse across forward calls)."""
    w3 = params["w3"].astype(compute_dtype).reshape(64, 1)
    b3 = params["b3"].astype(jnp.float32).reshape(1, 1)
    return {
        "w1": params["w1"].astype(compute_dtype),                 # [384, 128]
        "b1": params["b1"].astype(jnp.float32).reshape(1, 128),   # [1, 128]
        "w2": params["w2"].astype(compute_dtype),                 # [128, 64]
        "b2": params["b2"].astype(jnp.float32).reshape(1, 64),    # [1, 64]
        # Layer-3 weight laid out [8, 64] (row 0 real) for the batch->lanes matmul.
        "w3p": jnp.zeros((8, 64), compute_dtype).at[0, :].set(w3[:, 0]),
        "b3p": jnp.zeros((8, 1), jnp.float32).at[0:1, 0:1].set(b3),
    }


def _pick_tb(B: int, tb_max: int = 2048) -> int:
    """Batch-tile size. Multi-tile (megacore-friendly) tiles are multiples of 128 so
    the [8, tb] output blocks stay lane-aligned; tiny batches run as one tile."""
    if B <= 128:
        return _round_up(max(B, 1), 16)
    return min(tb_max, _round_up(-(-B // 2), 128))


def sentiment_forward(x, params, *, compute_dtype=jnp.bfloat16, tb_max=2048):
    """x: [B, 384] (f32 or bf16). params: raw (init_params) or prepared (prepare_params)."""
    if "w3p" not in params:
        params = prepare_params(params, compute_dtype)

    B, d_in = x.shape
    assert d_in == 384, d_in

    tb = _pick_tb(B, tb_max)
    n_tiles = -(-B // tb)           # ceil-div; last x block may be a partial read
    B_pad = n_tiles * tb            # only the tiny [8, B_pad] output slab is padded

    out_pad = pl.pallas_call(
        _mlp_kernel,
        out_shape=jax.ShapeDtypeStruct((8, B_pad), jnp.float32),
        grid_spec=pltpu.PrefetchScalarGridSpec(
            num_scalar_prefetch=0,
            grid=(n_tiles,),
            in_specs=[
                pl.BlockSpec((tb, 384), lambda i: (i, 0)),    # x tile (pipelined over batch)
                pl.BlockSpec((384, 128), lambda i: (0, 0)),   # w1 (resident)
                pl.BlockSpec((1, 128), lambda i: (0, 0)),     # b1
                pl.BlockSpec((128, 64), lambda i: (0, 0)),    # w2
                pl.BlockSpec((1, 64), lambda i: (0, 0)),      # b2
                pl.BlockSpec((8, 64), lambda i: (0, 0)),      # w3 (batch->lanes layout)
                pl.BlockSpec((8, 1), lambda i: (0, 0)),       # b3
            ],
            out_specs=pl.BlockSpec((8, tb), lambda i: (0, i)),
        ),
        compiler_params=pltpu.CompilerParams(
            # Batch tiles are independent -> shardable across the 2 TCs on v7x.
            dimension_semantics=("parallel",),
        ),
    )(x, params["w1"], params["b1"], params["w2"], params["b2"],
      params["w3p"], params["b3p"])

    # Row 0 holds the real logits; columns >= B are partial-block garbage -> dropped.
    return out_pad[0, :B].reshape(B, 1)


def init_params(key):
    """Deterministic init matching nn.Linear default: U(-1/sqrt(fan_in), 1/sqrt(fan_in))."""
    def linear(k, fan_in, fan_out):
        kw, kb = jax.random.split(k)
        bound = 1.0 / jnp.sqrt(fan_in)
        w = jax.random.uniform(kw, (fan_in, fan_out), jnp.float32, -bound, bound)
        b = jax.random.uniform(kb, (1, fan_out), jnp.float32, -bound, bound)
        return w, b

    k1, k2, k3 = jax.random.split(key, 3)
    w1, b1 = linear(k1, 384, 128)
    w2, b2 = linear(k2, 128, 64)
    w3, b3 = linear(k3, 64, 1)
    return {"w1": w1, "b1": b1, "w2": w2, "b2": b2, "w3": w3, "b3": b3}


def _reference(x, p, dtype=jnp.float32):
    """Pure-JAX reference using the same operand casts as the kernel path."""
    hp = lax.Precision.HIGHEST
    h1 = jnp.dot(x.astype(dtype), p["w1"].astype(dtype),
                 preferred_element_type=jnp.float32, precision=hp) + p["b1"]
    h1 = jnp.maximum(h1, 0.0)
    h2 = jnp.dot(h1.astype(dtype), p["w2"].astype(dtype),
                 preferred_element_type=jnp.float32, precision=hp) + p["b2"]
    h2 = jnp.maximum(h2, 0.0)
    return jnp.dot(h2.astype(dtype), p["w3"].astype(dtype),
                   preferred_element_type=jnp.float32, precision=hp) + p["b3"]


if __name__ == "__main__":
    key = jax.random.PRNGKey(0)
    kx, kp = jax.random.split(key)
    params = init_params(kp)
    prep_bf16 = prepare_params(params, jnp.bfloat16)
    prep_f32 = prepare_params(params, jnp.float32)

    # Small batch, single tile, bf16 compute path.
    B = 16
    x = jax.random.normal(kx, (B, 384), jnp.float32)
    out_bf16 = jax.block_until_ready(sentiment_forward(x, prep_bf16))
    ref_bf16 = _reference(x, params, jnp.bfloat16)
    assert out_bf16.shape == (B, 1), out_bf16.shape
    assert jnp.allclose(out_bf16, ref_bf16, atol=1e-2, rtol=1e-2), \
        float(jnp.max(jnp.abs(out_bf16 - ref_bf16)))

    # Full-f32 compute path.
    out_f32 = jax.block_until_ready(sentiment_forward(x, prep_f32))
    ref_f32 = _reference(x, params, jnp.float32)
    assert out_f32.shape == (B, 1), out_f32.shape
    assert jnp.allclose(out_f32, ref_f32, atol=5e-3, rtol=5e-3), \
        float(jnp.max(jnp.abs(out_f32 - ref_f32)))

    # Batch not a multiple of the sublane width -> partial x block (no jnp.pad path).
    B2 = 13
    x2 = jax.random.normal(kx, (B2, 384), jnp.float32)
    out2 = jax.block_until_ready(sentiment_forward(x2, prep_f32))
    ref2 = _reference(x2, params, jnp.float32)
    assert out2.shape == (B2, 1), out2.shape
    assert jnp.allclose(out2, ref2, atol=5e-3, rtol=5e-3), \
        float(jnp.max(jnp.abs(out2 - ref2)))

    # Multi-tile grid with a ragged last tile (2 grid steps, partial last x block).
    B3 = 300
    x3 = jax.random.normal(kx, (B3, 384), jnp.float32)
    out3 = jax.block_until_ready(sentiment_forward(x3, prep_bf16))
    ref3 = _reference(x3, params, jnp.bfloat16)
    assert out3.shape == (B3, 1), out3.shape
    assert jnp.allclose(out3, ref3, atol=1e-2, rtol=1e-2), \
        float(jnp.max(jnp.abs(out3 - ref3)))

    print("KERNEL_OK")
</pallas_src>

<mosaic_0001>
module attributes {stable_mosaic.version = 11 : i64} {
  func.func @_mlp_kernel(%arg0: i32, %arg1: memref<16x384xf32, #tpu.memory_space<vmem>>, %arg2: memref<384x128xbf16, #tpu.memory_space<vmem>>, %arg3: memref<1x128xf32, #tpu.memory_space<vmem>>, %arg4: memref<128x64xbf16, #tpu.memory_space<vmem>>, %arg5: memref<1x64xf32, #tpu.memory_space<vmem>>, %arg6: memref<8x64xbf16, #tpu.memory_space<vmem>>, %arg7: memref<8x1xf32, #tpu.memory_space<vmem>>, %arg8: memref<8x16xf32, #tpu.memory_space<vmem>>) attributes {dimension_semantics = [#tpu.dimension_semantics<parallel>], iteration_bounds = array<i64: 1>, scalar_prefetch = 0 : i64, scratch_operands = 0 : i64, tpu.core_type = #tpu.core_type<tc>, window_params = [{transform_indices = @transform_0, window_bounds = array<i64: 16, 384>}, {pipeline_mode = #tpu.pipeline_mode<synchronous>, transform_indices = @transform_1, window_bounds = array<i64: 384, 128>}, {pipeline_mode = #tpu.pipeline_mode<synchronous>, transform_indices = @transform_2, window_bounds = array<i64: 1, 128>}, {pipeline_mode = #tpu.pipeline_mode<synchronous>, transform_indices = @transform_3, window_bounds = array<i64: 128, 64>}, {pipeline_mode = #tpu.pipeline_mode<synchronous>, transform_indices = @transform_4, window_bounds = array<i64: 1, 64>}, {pipeline_mode = #tpu.pipeline_mode<synchronous>, transform_indices = @transform_5, window_bounds = array<i64: 8, 64>}, {pipeline_mode = #tpu.pipeline_mode<synchronous>, transform_indices = @transform_6, window_bounds = array<i64: 8, 1>}, {transform_indices = @transform_7, window_bounds = array<i64: 8, 16>}]} {
    %c0 = arith.constant 0 : index
    %c0_0 = arith.constant 0 : index
    %0 = vector.load %arg1[%c0, %c0_0] : memref<16x384xf32, #tpu.memory_space<vmem>>, vector<16x384xf32>
    %1 = arith.truncf %0 : vector<16x384xf32> to vector<16x384xbf16>
    %c0_1 = arith.constant 0 : index
    %c0_2 = arith.constant 0 : index
    %2 = vector.load %arg2[%c0_1, %c0_2] : memref<384x128xbf16, #tpu.memory_space<vmem>>, vector<384x128xbf16>
    %cst = arith.constant dense<0.000000e+00> : vector<16x128xf32>
    %3 = tpu.matmul %1, %2, %cst {dimension_numbers = #tpu.dot_dimension_numbers<[1], [0], [0], [1], [0, 0, 1, 1], [], []>} : vector<16x384xbf16>, vector<384x128xbf16>, vector<16x128xf32> -> vector<16x128xf32>
    %c0_3 = arith.constant 0 : index
    %c0_4 = arith.constant 0 : index
    %4 = vector.load %arg3[%c0_3, %c0_4] : memref<1x128xf32, #tpu.memory_space<vmem>>, vector<1x128xf32>
    %5 = vector.broadcast %4 : vector<1x128xf32> to vector<16x128xf32>
    %6 = arith.addf %3, %5 : vector<16x128xf32>
    %cst_5 = arith.constant 0.000000e+00 : f32
    %7 = vector.broadcast %cst_5 : f32 to vector<16x128xf32>
    %8 = arith.maximumf %6, %7 : vector<16x128xf32>
    %9 = arith.truncf %8 : vector<16x128xf32> to vector<16x128xbf16>
    %c0_6 = arith.constant 0 : index
    %c0_7 = arith.constant 0 : index
    %10 = vector.load %arg4[%c0_6, %c0_7] : memref<128x64xbf16, #tpu.memory_space<vmem>>, vector<128x64xbf16>
    %cst_8 = arith.constant dense<0.000000e+00> : vector<16x64xf32>
    %11 = tpu.matmul %9, %10, %cst_8 {dimension_numbers = #tpu.dot_dimension_numbers<[1], [0], [0], [1], [0, 0, 1, 1], [], []>} : vector<16x128xbf16>, vector<128x64xbf16>, vector<16x64xf32> -> vector<16x64xf32>
    %c0_9 = arith.constant 0 : index
    %c0_10 = arith.constant 0 : index
    %12 = vector.load %arg5[%c0_9, %c0_10] : memref<1x64xf32, #tpu.memory_space<vmem>>, vector<1x64xf32>
    %13 = vector.broadcast %12 : vector<1x64xf32> to vector<16x64xf32>
    %14 = arith.addf %11, %13 : vector<16x64xf32>
    %cst_11 = arith.constant 0.000000e+00 : f32
    %15 = vector.broadcast %cst_11 : f32 to vector<16x64xf32>
    %16 = arith.maximumf %14, %15 : vector<16x64xf32>
    %c0_12 = arith.constant 0 : index
    %c0_13 = arith.constant 0 : index
    %17 = vector.load %arg6[%c0_12, %c0_13] : memref<8x64xbf16, #tpu.memory_space<vmem>>, vector<8x64xbf16>
    %18 = arith.truncf %16 : vector<16x64xf32> to vector<16x64xbf16>
    %cst_14 = arith.constant dense<0.000000e+00> : vector<8x16xf32>
    %19 = tpu.matmul %17, %18, %cst_14 {dimension_numbers = #tpu.dot_dimension_numbers<[1], [1], [0], [0], [0, 0, 1, 0], [], []>} : vector<8x64xbf16>, vector<16x64xbf16>, vector<8x16xf32> -> vector<8x16xf32>
    %c0_15 = arith.constant 0 : index
    %c0_16 = arith.constant 0 : index
    %20 = vector.load %arg7[%c0_15, %c0_16] : memref<8x1xf32, #tpu.memory_space<vmem>>, vector<8x1xf32>
    %21 = vector.broadcast %20 : vector<8x1xf32> to vector<8x16xf32>
    %22 = arith.addf %19, %21 : vector<8x16xf32>
    %c0_17 = arith.constant 0 : index
    %c0_18 = arith.constant 0 : index
    %23 = vector.load %arg8[%c0_17, %c0_18] : memref<8x16xf32, #tpu.memory_space<vmem>>, vector<8x16xf32>
    tpu.vector_store %arg8[%c0_17, %c0_18], %22 {strides = array<i32>} : memref<8x16xf32, #tpu.memory_space<vmem>>, vector<8x16xf32>,
    return
  }
  func.func @transform_0(%arg0: i32) -> (i32, i32) {
    %c0_i32 = arith.constant 0 : i32
    %c0_i32_0 = arith.constant 0 : i32
    return %arg0, %c0_i32 : i32, i32
  }
  func.func @transform_1(%arg0: i32) -> (i32, i32) {
    %c0_i32 = arith.constant 0 : i32
    %c0_i32_0 = arith.constant 0 : i32
    %c0_i32_1 = arith.constant 0 : i32
    return %c0_i32, %c0_i32_0 : i32, i32
  }
  func.func @transform_2(%arg0: i32) -> (i32, i32) {
    %c0_i32 = arith.constant 0 : i32
    %c0_i32_0 = arith.constant 0 : i32
    %c0_i32_1 = arith.constant 0 : i32
    return %c0_i32, %c0_i32_0 : i32, i32
  }
  func.func @transform_3(%arg0: i32) -> (i32, i32) {
    %c0_i32 = arith.constant 0 : i32
    %c0_i32_0 = arith.constant 0 : i32
    %c0_i32_1 = arith.constant 0 : i32
    return %c0_i32, %c0_i32_0 : i32, i32
  }
  func.func @transform_4(%arg0: i32) -> (i32, i32) {
    %c0_i32 = arith.constant 0 : i32
    %c0_i32_0 = arith.constant 0 : i32
    %c0_i32_1 = arith.constant 0 : i32
    return %c0_i32, %c0_i32_0 : i32, i32
  }
  func.func @transform_5(%arg0: i32) -> (i32, i32) {
    %c0_i32 = arith.constant 0 : i32
    %c0_i32_0 = arith.constant 0 : i32
    %c0_i32_1 = arith.constant 0 : i32
    return %c0_i32, %c0_i32_0 : i32, i32
  }
  func.func @transform_6(%arg0: i32) -> (i32, i32) {
    %c0_i32 = arith.constant 0 : i32
    %c0_i32_0 = arith.constant 0 : i32
    %c0_i32_1 = arith.constant 0 : i32
    return %c0_i32, %c0_i32_0 : i32, i32
  }
  func.func @transform_7(%arg0: i32) -> (i32, i32) {
    %c0_i32 = arith.constant 0 : i32
    %c0_i32_0 = arith.constant 0 : i32
    return %c0_i32, %arg0 : i32, i32
  }
}

</mosaic_0001>

<llo_original>
// kernel: tpu_custom_call.1
$region0: #{tpu_custom_call.1}
  #allocation0 [shape = 'u32[]', space=smem, size = 0x4, offset = 0x4, fixed_abs, tag = 'smem constant byte address 0x4 - core index']
  #allocation1 [shape = 'u32[144,128]{1,0:T(1,128)}', space=vmem, size = 0x12000, scoped, tag = 'internal scratch']
  %s0 = inlined_call_operand.vmem [shape: f32[16,384], index: 0, kind: input, shape index: {}]
  %s1 = inlined_call_operand.hbm [shape: bf16[384,128], index: 1, kind: input, shape index: {}]
  %s2 = inlined_call_operand.vmem [shape: f32[1,128], index: 2, kind: input, shape index: {}]
  %s3 = inlined_call_operand.vmem [shape: bf16[128,64], index: 3, kind: input, shape index: {}]
  %s4 = inlined_call_operand.vmem [shape: f32[1,64], index: 4, kind: input, shape index: {}]
  %s5 = inlined_call_operand.vmem [shape: bf16[8,64], index: 5, kind: input, shape index: {}]
  %s6 = inlined_call_operand.vmem [shape: f32[8,1], index: 6, kind: input, shape index: {}]
  %s7 = inlined_call_operand.hbm [shape: f32[8,16], index: 7, kind: output, shape index: {}]
  %s8 = sld [smem:[#allocation0]]
  $region42: #{tpu_custom_call.1} parent=0
    _
  %s10 = ssub.s32 1, %s8
  %s11 = scalar_select 0, %s10, %s8
  $region1: #{tpu_custom_call.1} parent=0
    #allocation2 [shape = 'u8[98304]{0}', space=vmem, size = 0x18000, scoped, tag = 'input window, operand 1, single buffered']
    #allocation3 [shape = 's32[1]{0}', space=sflag, size = 0x4, scoped, tag = 'scoped memory for tpu_custom_call.1']
    #allocation4 [shape = 's32[1]{0}', space=sflag, size = 0x4, scoped, tag = 'scoped memory for tpu_custom_call.1']
    #allocation5 [shape = 'u8[4096]{0}', space=vmem, size = 0x1000, scoped, tag = 'output window, operand 0, single buffered']
    %12 = vsyncpa [#allocation3], 0
    %13 = vsyncpa [#allocation4], 0
    // Predicated region
    $region2: #{tpu_custom_call.1} parent=1 // pred_check
      _
    $region3: #{tpu_custom_call.1} parent=1 // pred_check_branch
      %15 = sbr.rel (0) target = $region5
    $region4: #{tpu_custom_call.1} parent=1 // pred_region
      _
    $region5: #{tpu_custom_call.1} parent=1 // pred_fallthru
      _
    // Predicated region
    $region6: #{tpu_custom_call.1} parent=1 // pred_check
      _
    $region7: #{tpu_custom_call.1} parent=1 // pred_check_branch
      %17 = sbr.rel (0) target = $region9
    $region8: #{tpu_custom_call.1} parent=1 // pred_region
      %s19 = ssub.s32 3072, 3072
      %20 = vsyncadd [#allocation3], %s19
      %s21 = sshll.u32 [#allocation2], 4
      %s22 = int_to_ptr.vmem [resolvable:$true] %s21
      %27 = dma.hbm_to_vmem [thread:$0]  %s1, 3072, %s22, [#allocation3], 64, 64, 4
    $region9: #{tpu_custom_call.1} parent=1 // pred_fallthru
      _
    // Predicated region
    $region10: #{tpu_custom_call.1} parent=1 // pred_check
      _
    $region11: #{tpu_custom_call.1} parent=1 // pred_check_branch
      %29 = sbr.rel (0) target = $region13
    $region12: #{tpu_custom_call.1} parent=1 // pred_region
      _
    $region13: #{tpu_custom_call.1} parent=1 // pred_fallthru
      _
    // Predicated region
    $region14: #{tpu_custom_call.1} parent=1 // pred_check
      _
    $region15: #{tpu_custom_call.1} parent=1 // pred_check_branch
      %31 = sbr.rel (0) target = $region17
    $region16: #{tpu_custom_call.1} parent=1 // pred_region
      _
    $region17: #{tpu_custom_call.1} parent=1 // pred_fallthru
      _
    // Predicated region
    $region18: #{tpu_custom_call.1} parent=1 // pred_check
      _
    $region19: #{tpu_custom_call.1} parent=1 // pred_check_branch
      %33 = sbr.rel (0) target = $region21
    $region20: #{tpu_custom_call.1} parent=1 // pred_region
      _
    $region21: #{tpu_custom_call.1} parent=1 // pred_fallthru
      _
    // Predicated region
    $region22: #{tpu_custom_call.1} parent=1 // pred_check
      _
    $region23: #{tpu_custom_call.1} parent=1 // pred_check_branch
      %35 = sbr.rel (0) target = $region25
    $region24: #{tpu_custom_call.1} parent=1 // pred_region
      _
    $region25: #{tpu_custom_call.1} parent=1 // pred_fallthru
      _
    // Predicated region
    $region26: #{tpu_custom_call.1} parent=1 // pred_check
      _
    $region27: #{tpu_custom_call.1} parent=1 // pred_check_branch
      %37 = sbr.rel (0) target = $region29
    $region28: #{tpu_custom_call.1} parent=1 // pred_region
      _
    $region29: #{tpu_custom_call.1} parent=1 // pred_fallthru
      _
    // Predicated region
    $region30: #{tpu_custom_call.1} parent=1 // pred_check
      _
    $region31: #{tpu_custom_call.1} parent=1 // pred_check_branch
      %39 = sbr.rel (0) target = $region33
    $region32: #{tpu_custom_call.1} parent=1 // pred_region
      %40 = dma.done [#allocation3], 3072
    $region33: #{tpu_custom_call.1} parent=1 // pred_fallthru
      _
    %v42 = vld [vmem:[%s0] sm:$0xff]
    %v43 = vld [vmem:[%s0 + $0x8] sm:$0xff]
    %v44 = vld [vmem:[%s0 + $0x10] sm:$0xff]
    %v45 = vld [vmem:[%s0 + $0x18] sm:$0xff]
    %v46 = vld [vmem:[%s0 + $0x20] sm:$0xff]
    %v47 = vld [vmem:[%s0 + $0x28] sm:$0xff]
    %v48 = vpack.c.bf16 %v45, %v42
    %v49 = vpack.c.bf16 %v46, %v43
    %v50 = vpack.c.bf16 %v47, %v44
    %v51 = vld [vmem:[#allocation2] sm:$0xf]
    %v52 = vld [vmem:[#allocation2 + $0x4] sm:$0xf]
    %v53 = vld [vmem:[#allocation2 + $0x8] sm:$0xf]
    %v54 = vld [vmem:[#allocation2 + $0xc] sm:$0xf]
    %v55 = vld [vmem:[#allocation2 + $0x10] sm:$0xf]
    %v56 = vld [vmem:[#allocation2 + $0x14] sm:$0xf]
    %v57 = vld [vmem:[#allocation2 + $0x18] sm:$0xf]
    %v58 = vld [vmem:[#allocation2 + $0x1c] sm:$0xf]
    %v59 = vld [vmem:[#allocation2 + $0x20] sm:$0xf]
    %v60 = vld [vmem:[#allocation2 + $0x24] sm:$0xf]
    %v61 = vld [vmem:[#allocation2 + $0x28] sm:$0xf]
    %v62 = vld [vmem:[#allocation2 + $0x2c] sm:$0xf]
    %v63 = vld [vmem:[#allocation2 + $0x30] sm:$0xf]
    %v64 = vld [vmem:[#allocation2 + $0x34] sm:$0xf]
    %v65 = vld [vmem:[#allocation2 + $0x38] sm:$0xf]
    %v66 = vld [vmem:[#allocation2 + $0x3c] sm:$0xf]
    %v67 = vld [vmem:[#allocation2 + $0x40] sm:$0xf]
    %v68 = vld [vmem:[#allocation2 + $0x44] sm:$0xf]
    %v69 = vld [vmem:[#allocation2 + $0x48] sm:$0xf]
    %v70 = vld [vmem:[#allocation2 + $0x4c] sm:$0xf]
    %v71 = vld [vmem:[#allocation2 + $0x50] sm:$0xf]
    %v72 = vld [vmem:[#allocation2 + $0x54] sm:$0xf]
    %v73 = vld [vmem:[#allocation2 + $0x58] sm:$0xf]
    %v74 = vld [vmem:[#allocation2 + $0x5c] sm:$0xf]
    %v75 = vld [vmem:[#allocation2 + $0x60] sm:$0xf]
    %v76 = vld [vmem:[#allocation2 + $0x64] sm:$0xf]
    %v77 = vld [vmem:[#allocation2 + $0x68] sm:$0xf]
    %v78 = vld [vmem:[#allocation2 + $0x6c] sm:$0xf]
    %v79 = vld [vmem:[#allocation2 + $0x70] sm:$0xf]
    %v80 = vld [vmem:[#allocation2 + $0x74] sm:$0xf]
    %v81 = vld [vmem:[#allocation2 + $0x78] sm:$0xf]
    %v82 = vld [vmem:[#allocation2 + $0x7c] sm:$0xf]
    %v83 = vld [vmem:[#allocation2 + $0x80] sm:$0xf]
    %v84 = vld [vmem:[#allocation2 + $0x84] sm:$0xf]
    %v85 = vld [vmem:[#allocation2 + $0x88] sm:$0xf]
    %v86 = vld [vmem:[#allocation2 + $0x8c] sm:$0xf]
    %v87 = vld [vmem:[#allocation2 + $0x90] sm:$0xf]
    %v88 = vld [vmem:[#allocation2 + $0x94] sm:$0xf]
    %v89 = vld [vmem:[#allocation2 + $0x98] sm:$0xf]
    %v90 = vld [vmem:[#allocation2 + $0x9c] sm:$0xf]
    %v91 = vld [vmem:[#allocation2 + $0xa0] sm:$0xf]
    %v92 = vld [vmem:[#allocation2 + $0xa4] sm:$0xf]
    %v93 = vld [vmem:[#allocation2 + $0xa8] sm:$0xf]
    %v94 = vld [vmem:[#allocation2 + $0xac] sm:$0xf]
    %v95 = vld [vmem:[#allocation2 + $0xb0] sm:$0xf]
    %v96 = vld [vmem:[#allocation2 + $0xb4] sm:$0xf]
    %v97 = vld [vmem:[#allocation2 + $0xb8] sm:$0xf]
    %v98 = vld [vmem:[#allocation2 + $0xbc] sm:$0xf]
    %v99 = vld [vmem:[%s2] sm:$0x1]
    %v101 = vlaneseq
    %v102 = vshrl.u32 %v101, 7
    %v103 = vsub.s32 0, %v102
    %v104 = vrot.slane %v99, %v103
    %v154 = vunpack.c.l.b16 %v51
    %v155 = vunpack.c.l.b16 %v52
    %v156 = vunpack.c.l.b16 %v53
    %v157 = vunpack.c.l.b16 %v54
    %v158 = vunpack.c.l.b16 %v55
    %v159 = vunpack.c.l.b16 %v56
    %v160 = vunpack.c.l.b16 %v57
    %v161 = vunpack.c.l.b16 %v58
    %v162 = vunpack.c.l.b16 %v59
    %v163 = vunpack.c.l.b16 %v60
    %v164 = vunpack.c.l.b16 %v61
    %v165 = vunpack.c.l.b16 %v62
    %v166 = vunpack.c.l.b16 %v63
    %v167 = vunpack.c.l.b16 %v64
    %v168 = vunpack.c.l.b16 %v65
    %v169 = vunpack.c.l.b16 %v66
    %v170 = vunpack.c.l.b16 %v67
    %v171 = vunpack.c.l.b16 %v68
    %v172 = vunpack.c.l.b16 %v69
    %v173 = vunpack.c.l.b16 %v70
    %v174 = vunpack.c.l.b16 %v71
    %v175 = vunpack.c.l.b16 %v72
    %v176 = vunpack.c.l.b16 %v73
    %v177 = vunpack.c.l.b16 %v74
    %v178 = vunpack.c.l.b16 %v75
    %v179 = vunpack.c.l.b16 %v76
    %v180 = vunpack.c.l.b16 %v77
    %v181 = vunpack.c.l.b16 %v78
    %v182 = vunpack.c.l.b16 %v79
    %v183 = vunpack.c.l.b16 %v80
    %v184 = vunpack.c.l.b16 %v81
    %v185 = vunpack.c.l.b16 %v82
    %v186 = vunpack.c.l.b16 %v83
    %v187 = vunpack.c.l.b16 %v84
    %v188 = vunpack.c.l.b16 %v85
    %v189 = vunpack.c.l.b16 %v86
    %v190 = vunpack.c.l.b16 %v87
    %v191 = vunpack.c.l.b16 %v88
    %v192 = vunpack.c.l.b16 %v89
    %v193 = vunpack.c.l.b16 %v90
    %v194 = vunpack.c.l.b16 %v91
    %v195 = vunpack.c.l.b16 %v92
    %v196 = vunpack.c.l.b16 %v93
    %v197 = vunpack.c.l.b16 %v94
    %v198 = vunpack.c.l.b16 %v95
    %v199 = vunpack.c.l.b16 %v96
    %v200 = vunpack.c.l.b16 %v97
    %v201 = vunpack.c.l.b16 %v98
    %v202 = vpack.c.b16 %v155, %v154
    %v203 = vpack.c.b16 %v157, %v156
    %v204 = vpack.c.b16 %v159, %v158
    %v205 = vpack.c.b16 %v161, %v160
    %v206 = vpack.c.b16 %v163, %v162
    %v207 = vpack.c.b16 %v165, %v164
    %v208 = vpack.c.b16 %v167, %v166
    %v209 = vpack.c.b16 %v169, %v168
    %v210 = vpack.c.b16 %v171, %v170
    %v211 = vpack.c.b16 %v173, %v172
    %v212 = vpack.c.b16 %v175, %v174
    %v213 = vpack.c.b16 %v177, %v176
    %v214 = vpack.c.b16 %v179, %v178
    %v215 = vpack.c.b16 %v181, %v180
    %v216 = vpack.c.b16 %v183, %v182
    %v217 = vpack.c.b16 %v185, %v184
    %v218 = vpack.c.b16 %v187, %v186
    %v219 = vpack.c.b16 %v189, %v188
    %v220 = vpack.c.b16 %v191, %v190
    %v221 = vpack.c.b16 %v193, %v192
    %v222 = vpack.c.b16 %v195, %v194
    %v223 = vpack.c.b16 %v197, %v196
    %v224 = vpack.c.b16 %v199, %v198
    %v225 = vpack.c.b16 %v201, %v200
    %250 = vmatprep.subr.bf16.mxu0 0
    %251 = vmatpush1.bf16.msra.mxu0 %v202
    %252 = vmatprep.subr.bf16.mxu0 0
    %253 = vmatpush1.bf16.msra.mxu0 %v203
    %254 = vmatprep.subr.bf16.mxu0 0
    %255 = vmatpush1.bf16.msra.mxu0 %v204
    %256 = vmatprep.subr.bf16.mxu0 0
    %257 = vmatpush1.bf16.msra.mxu0 %v205
    %258 = vmatprep.subr.bf16.mxu0 0
    %259 = vmatpush1.bf16.msra.mxu0 %v206
    %260 = vmatprep.subr.bf16.mxu0 0
    %261 = vmatpush1.bf16.msra.mxu0 %v207
    %262 = vmatprep.subr.bf16.mxu0 0
    %263 = vmatpush1.bf16.msra.mxu0 %v208
    %264 = vmatprep.subr.bf16.mxu0 0
    %265 = vmatpush1.bf16.msra.mxu0 %v209
    %266 = vmatprep.subr.bf16.mxu0 0
    %267 = vmatpush1.bf16.msra.mxu0 %v210
    %268 = vmatprep.subr.bf16.mxu0 0
    %269 = vmatpush1.bf16.msra.mxu0 %v211
    %270 = vmatprep.subr.bf16.mxu0 0
    %271 = vmatpush1.bf16.msra.mxu0 %v212
    %272 = vmatprep.subr.bf16.mxu0 0
    %273 = vmatpush1.bf16.msra.mxu0 %v213
    %274 = vmatprep.subr.bf16.mxu0 0
    %275 = vmatpush1.bf16.msra.mxu0 %v214
    %276 = vmatprep.subr.bf16.mxu0 0
    %277 = vmatpush1.bf16.msra.mxu0 %v215
    %278 = vmatprep.subr.bf16.mxu0 0
    %279 = vmatpush1.bf16.msra.mxu0 %v216
    %280 = vmatprep.subr.bf16.mxu0 0
    %281 = vmatpush1.bf16.msra.mxu0 %v217
    %282 = vmatprep.mubr.bf16.mxu0 %v49
    %283 = vmatmul.mubr.bf16.gmra.mrb[0].mxu0 %v48
    %v284 = vpop.f32.mrb[0].mxu0
    %v285 = vadd.f32 %v104, %v284
    %v286 = vpop.f32.mrb[0].mxu0
    %v287 = vpop.f32.mrb[0].mxu0
    %v288 = vadd.f32 %v104, %v287
    %v289 = vpop.f32.mrb[0].mxu0
    %290 = vdwg.mxu0
    %291 = vmatprep.subr.bf16.mxu0 0
    %292 = vmatpush1.bf16.msra.mxu0 %v218
    %293 = vmatprep.subr.bf16.mxu0 0
    %294 = vmatpush1.bf16.msra.mxu0 %v219
    %295 = vmatprep.subr.bf16.mxu0 0
    %296 = vmatpush1.bf16.msra.mxu0 %v220
    %297 = vmatprep.subr.bf16.mxu0 0
    %298 = vmatpush1.bf16.msra.mxu0 %v221
    %299 = vmatprep.subr.bf16.mxu0 0
    %300 = vmatpush1.bf16.msra.mxu0 %v222
    %301 = vmatprep.subr.bf16.mxu0 0
    %302 = vmatpush1.bf16.msra.mxu0 %v223
    %303 = vmatprep.subr.bf16.mxu0 0
    %304 = vmatpush1.bf16.msra.mxu0 %v224
    %305 = vmatprep.subr.bf16.mxu0 0
    %306 = vmatpush1.bf16.msra.mxu0 %v225
    %307 = vmatprep.subr.bf16.mxu0 0
    %308 = vmatpush1.bf16.msra.mxu0 0
    %309 = vmatprep.subr.bf16.mxu0 0
    %310 = vmatpush1.bf16.msra.mxu0 0
    %311 = vmatprep.subr.bf16.mxu0 0
    %312 = vmatpush1.bf16.msra.mxu0 0
    %313 = vmatprep.subr.bf16.mxu0 0
    %314 = vmatpush1.bf16.msra.mxu0 0
    %315 = vmatprep.subr.bf16.mxu0 0
    %316 = vmatpush1.bf16.msra.mxu0 0
    %317 = vmatprep.subr.bf16.mxu0 0
    %318 = vmatpush1.bf16.msra.mxu0 0
    %319 = vmatprep.subr.bf16.mxu0 0
    %320 = vmatpush1.bf16.msra.mxu0 0
    %321 = vmatprep.subr.bf16.mxu0 0
    %322 = vmatpush1.bf16.msra.mxu0 0
    %323 = vmatprep.mubr.bf16.mxu0 0
    %324 = vmatmul.mubr.bf16.gmra.mrb[0].mxu0 %v50
    %v325 = vpop.f32.mrb[0].mxu0
    %v326 = vadd.f32 %v285, %v325
    %v327 = vpop.f32.mrb[0].mxu0
    %v328 = vpop.f32.mrb[0].mxu0
    %v329 = vadd.f32 %v288, %v328
    %v330 = vpop.f32.mrb[0].mxu0
    %331 = vdwg.mxu0
    %v332 = vmax.f32 %v326, 0.0
    %v333 = vmax.f32 %v329, 0.0
    %v334 = vpack.c.bf16 %v333, %v332
    %v335 = vld [vmem:[%s3] sm:$0xf]
    %v336 = vld [vmem:[%s3 + $0x4] sm:$0xf]
    %v337 = vld [vmem:[%s3 + $0x8] sm:$0xf]
    %v338 = vld [vmem:[%s3 + $0xc] sm:$0xf]
    %v339 = vld [vmem:[%s3 + $0x10] sm:$0xf]
    %v340 = vld [vmem:[%s3 + $0x14] sm:$0xf]
    %v341 = vld [vmem:[%s3 + $0x18] sm:$0xf]
    %v342 = vld [vmem:[%s3 + $0x1c] sm:$0xf]
    %v343 = vld [vmem:[%s3 + $0x20] sm:$0xf]
    %v344 = vld [vmem:[%s3 + $0x24] sm:$0xf]
    %v345 = vld [vmem:[%s3 + $0x28] sm:$0xf]
    %v346 = vld [vmem:[%s3 + $0x2c] sm:$0xf]
    %v347 = vld [vmem:[%s3 + $0x30] sm:$0xf]
    %v348 = vld [vmem:[%s3 + $0x34] sm:$0xf]
    %v349 = vld [vmem:[%s3 + $0x38] sm:$0xf]
    %v350 = vld [vmem:[%s3 + $0x3c] sm:$0xf]
    %v351 = vld [vmem:[%s4] sm:$0x1]
    %v353 = vlaneseq
    %v354 = vshrl.u32 %v353, 7
    %v355 = vsub.s32 0, %v354
    %v356 = vrot.slane %v351, %v355
    %v374 = vunpack.c.l.b16 %v335
    %v375 = vunpack.c.l.b16 %v336
    %v376 = vunpack.c.l.b16 %v337
    %v377 = vunpack.c.l.b16 %v338
    %v378 = vunpack.c.l.b16 %v339
    %v379 = vunpack.c.l.b16 %v340
    %v380 = vunpack.c.l.b16 %v341
    %v381 = vunpack.c.l.b16 %v342
    %v382 = vunpack.c.l.b16 %v343
    %v383 = vunpack.c.l.b16 %v344
    %v384 = vunpack.c.l.b16 %v345
    %v385 = vunpack.c.l.b16 %v346
    %v386 = vunpack.c.l.b16 %v347
    %v387 = vunpack.c.l.b16 %v348
    %v388 = vunpack.c.l.b16 %v349
    %v389 = vunpack.c.l.b16 %v350
    %v390 = vpack.c.b16 %v375, %v374
    %v391 = vpack.c.b16 %v377, %v376
    %v392 = vpack.c.b16 %v379, %v378
    %v393 = vpack.c.b16 %v381, %v380
    %v394 = vpack.c.b16 %v383, %v382
    %v395 = vpack.c.b16 %v385, %v384
    %v396 = vpack.c.b16 %v387, %v386
    %v397 = vpack.c.b16 %v389, %v388
    %406 = vmatprep.subr.bf16.mxu0 0
    %407 = vmatpush1.bf16.msra.mxu0 %v390
    %408 = vmatprep.subr.bf16.mxu0 0
    %409 = vmatpush1.bf16.msra.mxu0 %v391
    %410 = vmatprep.subr.bf16.mxu0 0
    %411 = vmatpush1.bf16.msra.mxu0 %v392
    %412 = vmatprep.subr.bf16.mxu0 0
    %413 = vmatpush1.bf16.msra.mxu0 %v393
    %414 = vmatprep.subr.bf16.mxu0 0
    %415 = vmatpush1.bf16.msra.mxu0 %v394
    %416 = vmatprep.subr.bf16.mxu0 0
    %417 = vmatpush1.bf16.msra.mxu0 %v395
    %418 = vmatprep.subr.bf16.mxu0 0
    %419 = vmatpush1.bf16.msra.mxu0 %v396
    %420 = vmatprep.subr.bf16.mxu0 0
    %421 = vmatpush1.bf16.msra.mxu0 %v397
    %422 = vmatprep.subr.bf16.mxu0 0
    %423 = vmatpush1.bf16.msra.mxu0 0
    %424 = vmatprep.subr.bf16.mxu0 0
    %425 = vmatpush1.bf16.msra.mxu0 0
    %426 = vmatprep.subr.bf16.mxu0 0
    %427 = vmatpush1.bf16.msra.mxu0 0
    %428 = vmatprep.subr.bf16.mxu0 0
    %429 = vmatpush1.bf16.msra.mxu0 0
    %430 = vmatprep.subr.bf16.mxu0 0
    %431 = vmatpush1.bf16.msra.mxu0 0
    %432 = vmatprep.subr.bf16.mxu0 0
    %433 = vmatpush1.bf16.msra.mxu0 0
    %434 = vmatprep.subr.bf16.mxu0 0
    %435 = vmatpush1.bf16.msra.mxu0 0
    %436 = vmatprep.subr.bf16.mxu0 0
    %437 = vmatpush1.bf16.msra.mxu0 0
    %438 = vmatprep.mubr.bf16.mxu0 0
    %439 = vmatmul.mubr.bf16.gmra.mrb[0].mxu0 %v334
    %v440 = vpop.f32.mrb[0].mxu0
    %v441 = vadd.f32 %v356, %v440
    %v442 = vpop.f32.mrb[0].mxu0
    %v443 = vpop.f32.mrb[0].mxu0
    %v444 = vadd.f32 %v356, %v443
    %v445 = vpop.f32.mrb[0].mxu0
    %446 = vdwg.mxu0
    %v447 = vmax.f32 %v441, 0.0
    %v448 = vmax.f32 %v444, 0.0
    %v449 = vld [vmem:[%s5] sm:$0xf]
    %v450 = vpack.c.bf16 %v448, %v447
    %v451 = vld [vmem:[%s6] sm:$0xff]
    %453 = vset.pattern.permute.xlu0 0
    %454 = vperm.xlu0 %453, %v451
    %v455 = vpop.permute.xlu0 %454
    %vm457 = vcmask 523264
    %v459 = vsel %vm457, %v449, 0
    %v462 = vsel %vm457, %v450, 0
    %464 = vmatprep.subr.bf16.mxu0 0
    %465 = vmatpush1.bf16.xpose.msra.mxu0 %v462
    %466 = vmatprep.subr.bf16.mxu0 0
    %467 = vmatpush1.bf16.xpose.msra.mxu0 0
    %468 = vmatprep.subr.bf16.mxu0 0
    %469 = vmatpush1.bf16.xpose.msra.mxu0 0
    %470 = vmatprep.subr.bf16.mxu0 0
    %471 = vmatpush1.bf16.xpose.msra.mxu0 0
    %472 = vmatprep.subr.bf16.mxu0 0
    %473 = vmatpush1.bf16.xpose.msra.mxu0 0
    %474 = vmatprep.subr.bf16.mxu0 0
    %475 = vmatpush1.bf16.xpose.msra.mxu0 0
    %476 = vmatprep.subr.bf16.mxu0 0
    %477 = vmatpush1.bf16.xpose.msra.mxu0 0
    %478 = vmatprep.subr.bf16.mxu0 0
    %479 = vmatpush1.bf16.xpose.msra.mxu0 0
    %480 = vmatprep.subr.bf16.mxu0 0
    %481 = vmatpush1.bf16.xpose.msra.mxu0 0
    %482 = vmatprep.subr.bf16.mxu0 0
    %483 = vmatpush1.bf16.xpose.msra.mxu0 0
    %484 = vmatprep.subr.bf16.mxu0 0
    %485 = vmatpush1.bf16.xpose.msra.mxu0 0
    %486 = vmatprep.subr.bf16.mxu0 0
    %487 = vmatpush1.bf16.xpose.msra.mxu0 0
    %488 = vmatprep.subr.bf16.mxu0 0
    %489 = vmatpush1.bf16.xpose.msra.mxu0 0
    %490 = vmatprep.subr.bf16.mxu0 0
    %491 = vmatpush1.bf16.xpose.msra.mxu0 0
    %492 = vmatprep.subr.bf16.mxu0 0
    %493 = vmatpush1.bf16.xpose.msra.mxu0 0
    %494 = vmatprep.subr.bf16.mxu0 0
    %495 = vmatpush1.bf16.xpose.msra.mxu0 0
    %496 = vmatprep.mubr.bf16.mxu0 0
    %497 = vmatmul.mubr.bf16.gmra.mrb[0].mxu0 %v459
    %v498 = vpop.f32.mrb[0].mxu0
    %v499 = vadd.f32 %v455, %v498
    %v500 = vpop.f32.mrb[0].mxu0
    %v501 = vpop.f32.mrb[0].mxu0
    %v502 = vpop.f32.mrb[0].mxu0
    %503 = vdwg.mxu0
    %vm504 = vcmask 130048
    %505 = vst.msk [vmem:[#allocation5] sm:$0xff] %vm504, %v499
    // Predicated region
    $region34: #{tpu_custom_call.1} parent=1 // pred_check
      _
    $region35: #{tpu_custom_call.1} parent=1 // pred_check_branch
      %507 = sbr.rel (0) target = $region37
    $region36: #{tpu_custom_call.1} parent=1 // pred_region
      %s509 = ssub.s32 128, 128
      %510 = vsyncadd [#allocation4], %s509
      %s512 = sshll.u32 [#allocation5], 4
      %s513 = int_to_ptr.vmem [resolvable:$true] %s512
      %515 = dma.vmem_to_hbm [thread:$0]  %s513, 128, %s7, [#allocation4]
    $region37: #{tpu_custom_call.1} parent=1 // pred_fallthru
      _
    // Predicated region
    $region38: #{tpu_custom_call.1} parent=1 // pred_check
      _
    $region39: #{tpu_custom_call.1} parent=1 // pred_check_branch
      %517 = sbr.rel (0) target = $region41
    $region40: #{tpu_custom_call.1} parent=1 // pred_region
      %518 = dma.done [#allocation4], 128
    $region41: #{tpu_custom_call.1} parent=1 // pred_fallthru
      _
    %519 = vsyncpa [#allocation3], 1
    %520 = vsyncpa [#allocation4], 1

</llo_original>
